<compile_context>
chip_gen: v7x
topology: tpu7x:2x2x1
jax: 0.10.0
libtpu: 0.0.40
codegen_flags: <defaults>
</compile_context>

<pallas_src>
import functools

import jax
import jax.numpy as jnp
from jax.experimental import pallas as pl
from jax.experimental.pallas import tpu as pltpu

_LANE = 128
_TILE_BUDGET_BYTES = 16 * 1024 * 1024   # resident-tile budget (fits v7x scoped VMEM)
_VMEM_LIMIT_BYTES = 32 * 1024 * 1024


def _se_scale_sum_kernel(*refs, num_tensors):
    """refs = x_0..x_{T-1} (1,C,tS), s_0..s_{T-1} (1,C,1), o_ref (1,C,tS)."""
    x_refs = refs[:num_tensors]
    s_refs = refs[num_tensors:2 * num_tensors]
    o_ref = refs[2 * num_tensors]

    # Scale each tensor's tile by its per-channel SE scale and accumulate.
    acc = x_refs[0][0] * s_refs[0][0]                      # (C, tS) * (C, 1)
    for t in range(1, num_tensors):
        acc = acc + x_refs[t][0] * s_refs[t][0]
    o_ref[0] = acc


def _choose_spatial_tile(S, C, T, bytes_per_elem=4, budget=_TILE_BUDGET_BYTES):
    """Pick a lane-dense spatial tile that divides S and fits the VMEM budget."""
    if S % _LANE != 0:
        # A full-extent block along the last dim is always legal.
        return S
    # Per grid step: T input tiles + 1 output tile, double-buffered by Pallas.
    per_lane_bytes = (T + 1) * max(C, 8) * bytes_per_elem * 2
    max_lane_blocks = max(1, (budget // per_lane_bytes) // _LANE)
    n_blocks = S // _LANE
    k = min(n_blocks, max_lane_blocks)
    while n_blocks % k != 0:   # largest divisor of (S/128) within the budget
        k -= 1
    return k * _LANE


def se_fusion(tensors, w1, b1, w2, b2):
    """tensors: list of T arrays (N, C, D, H, W) float32.  Returns (N, C, D, H, W)."""
    num_tensors = len(tensors)
    N, C, D, H, W = tensors[0].shape
    S = D * H * W

    # --- flatten spatial dims (free reshape, no HBM copy) ---------------------
    xs = [t.reshape(N, C, S) for t in tensors]

    # --- SE excitation on the pooled means (tiny, plain JAX) ------------------
    pooled = jnp.concatenate([x.mean(axis=-1) for x in xs], axis=1)      # (N, CT)
    s1 = jax.nn.relu(pooled @ w1.T + b1)                                 # (N, CT)
    s2 = jax.nn.sigmoid(s1 @ w2.T + b2)                                  # (N, CT)
    scales = [s2[:, t * C:(t + 1) * C].reshape(N, C, 1)
              for t in range(num_tensors)]

    # --- streaming scale + reduce kernel over (N, S_tiles) --------------------
    tS = _choose_spatial_tile(S, C, num_tensors)
    grid = (N, S // tS)

    x_spec = pl.BlockSpec((1, C, tS), lambda n, s: (n, 0, s))
    scale_spec = pl.BlockSpec((1, C, 1), lambda n, s: (n, 0, 0))
    out_spec = pl.BlockSpec((1, C, tS), lambda n, s: (n, 0, s))

    kernel = functools.partial(_se_scale_sum_kernel, num_tensors=num_tensors)

    out = pl.pallas_call(
        kernel,
        out_shape=jax.ShapeDtypeStruct((N, C, S), jnp.float32),
        grid=grid,
        in_specs=[x_spec] * num_tensors + [scale_spec] * num_tensors,
        out_specs=out_spec,
        compiler_params=pltpu.CompilerParams(
            dimension_semantics=("parallel", "parallel"),
            vmem_limit_bytes=_VMEM_LIMIT_BYTES),
    )(*xs, *scales)

    return out.reshape(N, C, D, H, W)


def _reference(tensors, w1, b1, w2, b2, channels):
    xcat = jnp.concatenate(tensors, axis=1)                 # (N, CT, D, H, W)
    T = xcat.shape[1] // channels
    pooled = jnp.mean(xcat, axis=(2, 3, 4))                 # (N, CT)
    s1 = jax.nn.relu(pooled @ w1.T + b1)
    s2 = jax.nn.sigmoid(s1 @ w2.T + b2)
    scaled = xcat * s2[:, :, None, None, None]
    N, CT, D, H, W = scaled.shape
    return scaled.reshape(N, T, channels, D, H, W).sum(axis=1)


if __name__ == "__main__":
    N, C, T = 2, 4, 3
    D, H, W = 4, 8, 8
    CT = C * T

    key = jax.random.PRNGKey(0)
    keys = jax.random.split(key, T + 4)
    tensors = [jax.random.normal(keys[i], (N, C, D, H, W), jnp.float32)
               for i in range(T)]
    # Synthetic SE parameters: fc weights are (out, in) like the flattened
    # Conv3d 1x1x1 weights; squeeze_channels == in_channels == CT.
    w1 = jax.random.normal(keys[T + 0], (CT, CT), jnp.float32) * 0.1
    b1 = jax.random.normal(keys[T + 1], (CT,), jnp.float32) * 0.1
    w2 = jax.random.normal(keys[T + 2], (CT, CT), jnp.float32) * 0.1
    b2 = jax.random.normal(keys[T + 3], (CT,), jnp.float32) * 0.1

    out = jax.block_until_ready(se_fusion(tensors, w1, b1, w2, b2))

    ref = _reference(tensors, w1, b1, w2, b2, C)
    assert out.shape == (N, C, D, H, W)
    assert jnp.allclose(out, ref, atol=1e-5, rtol=1e-5), \
        float(jnp.max(jnp.abs(out - ref)))

    print("KERNEL_OK")
</pallas_src>

<mosaic_0001>
module attributes {stable_mosaic.version = 11 : i64} {
  func.func @_se_scale_sum_kernel(%arg0: i32, %arg1: i32, %arg2: memref<1x4x256xf32, #tpu.memory_space<vmem>>, %arg3: memref<1x4x256xf32, #tpu.memory_space<vmem>>, %arg4: memref<1x4x256xf32, #tpu.memory_space<vmem>>, %arg5: memref<1x4x1xf32, #tpu.memory_space<vmem>>, %arg6: memref<1x4x1xf32, #tpu.memory_space<vmem>>, %arg7: memref<1x4x1xf32, #tpu.memory_space<vmem>>, %arg8: memref<1x4x256xf32, #tpu.memory_space<vmem>>) attributes {dimension_semantics = [#tpu.dimension_semantics<parallel>, #tpu.dimension_semantics<parallel>], iteration_bounds = array<i64: 2, 1>, scalar_prefetch = 0 : i64, scratch_operands = 0 : i64, tpu.core_type = #tpu.core_type<tc>, window_params = [{transform_indices = @transform_0, window_bounds = array<i64: 1, 4, 256>}, {transform_indices = @transform_1, window_bounds = array<i64: 1, 4, 256>}, {transform_indices = @transform_2, window_bounds = array<i64: 1, 4, 256>}, {transform_indices = @transform_3, window_bounds = array<i64: 1, 4, 1>}, {transform_indices = @transform_4, window_bounds = array<i64: 1, 4, 1>}, {transform_indices = @transform_5, window_bounds = array<i64: 1, 4, 1>}, {transform_indices = @transform_6, window_bounds = array<i64: 1, 4, 256>}]} {
    %c0 = arith.constant 0 : index
    %c0_0 = arith.constant 0 : index
    %c0_1 = arith.constant 0 : index
    %0 = vector.load %arg2[%c0, %c0_0, %c0_1] : memref<1x4x256xf32, #tpu.memory_space<vmem>>, vector<1x4x256xf32>
    %1 = vector.shape_cast %0 : vector<1x4x256xf32> to vector<4x256xf32>
    %c0_2 = arith.constant 0 : index
    %c0_3 = arith.constant 0 : index
    %c0_4 = arith.constant 0 : index
    %2 = vector.load %arg5[%c0_2, %c0_3, %c0_4] : memref<1x4x1xf32, #tpu.memory_space<vmem>>, vector<1x4x1xf32>
    %3 = vector.shape_cast %2 : vector<1x4x1xf32> to vector<4x1xf32>
    %4 = vector.broadcast %3 : vector<4x1xf32> to vector<4x256xf32>
    %5 = arith.mulf %1, %4 : vector<4x256xf32>
    %c0_5 = arith.constant 0 : index
    %c0_6 = arith.constant 0 : index
    %c0_7 = arith.constant 0 : index
    %6 = vector.load %arg3[%c0_5, %c0_6, %c0_7] : memref<1x4x256xf32, #tpu.memory_space<vmem>>, vector<1x4x256xf32>
    %7 = vector.shape_cast %6 : vector<1x4x256xf32> to vector<4x256xf32>
    %c0_8 = arith.constant 0 : index
    %c0_9 = arith.constant 0 : index
    %c0_10 = arith.constant 0 : index
    %8 = vector.load %arg6[%c0_8, %c0_9, %c0_10] : memref<1x4x1xf32, #tpu.memory_space<vmem>>, vector<1x4x1xf32>
    %9 = vector.shape_cast %8 : vector<1x4x1xf32> to vector<4x1xf32>
    %10 = vector.broadcast %9 : vector<4x1xf32> to vector<4x256xf32>
    %11 = arith.mulf %7, %10 : vector<4x256xf32>
    %12 = arith.addf %5, %11 : vector<4x256xf32>
    %c0_11 = arith.constant 0 : index
    %c0_12 = arith.constant 0 : index
    %c0_13 = arith.constant 0 : index
    %13 = vector.load %arg4[%c0_11, %c0_12, %c0_13] : memref<1x4x256xf32, #tpu.memory_space<vmem>>, vector<1x4x256xf32>
    %14 = vector.shape_cast %13 : vector<1x4x256xf32> to vector<4x256xf32>
    %c0_14 = arith.constant 0 : index
    %c0_15 = arith.constant 0 : index
    %c0_16 = arith.constant 0 : index
    %15 = vector.load %arg7[%c0_14, %c0_15, %c0_16] : memref<1x4x1xf32, #tpu.memory_space<vmem>>, vector<1x4x1xf32>
    %16 = vector.shape_cast %15 : vector<1x4x1xf32> to vector<4x1xf32>
    %17 = vector.broadcast %16 : vector<4x1xf32> to vector<4x256xf32>
    %18 = arith.mulf %14, %17 : vector<4x256xf32>
    %19 = arith.addf %12, %18 : vector<4x256xf32>
    %c0_17 = arith.constant 0 : index
    %c0_18 = arith.constant 0 : index
    %c0_19 = arith.constant 0 : index
    %20 = vector.load %arg8[%c0_17, %c0_18, %c0_19] : memref<1x4x256xf32, #tpu.memory_space<vmem>>, vector<1x4x256xf32>
    %21 = vector.shape_cast %20 : vector<1x4x256xf32> to vector<4x256xf32>
    %22 = vector.shape_cast %19 : vector<4x256xf32> to vector<1x4x256xf32>
    tpu.vector_store %arg8[%c0_17, %c0_18, %c0_19], %22 {strides = array<i32>} : memref<1x4x256xf32, #tpu.memory_space<vmem>>, vector<1x4x256xf32>,
    return
  }
  func.func @transform_0(%arg0: i32, %arg1: i32) -> (i32, i32, i32) {
    %c0_i32 = arith.constant 0 : i32
    %c0_i32_0 = arith.constant 0 : i32
    return %arg0, %c0_i32, %arg1 : i32, i32, i32
  }
  func.func @transform_1(%arg0: i32, %arg1: i32) -> (i32, i32, i32) {
    %c0_i32 = arith.constant 0 : i32
    %c0_i32_0 = arith.constant 0 : i32
    return %arg0, %c0_i32, %arg1 : i32, i32, i32
  }
  func.func @transform_2(%arg0: i32, %arg1: i32) -> (i32, i32, i32) {
    %c0_i32 = arith.constant 0 : i32
    %c0_i32_0 = arith.constant 0 : i32
    return %arg0, %c0_i32, %arg1 : i32, i32, i32
  }
  func.func @transform_3(%arg0: i32, %arg1: i32) -> (i32, i32, i32) {
    %c0_i32 = arith.constant 0 : i32
    %c0_i32_0 = arith.constant 0 : i32
    %c0_i32_1 = arith.constant 0 : i32
    return %arg0, %c0_i32, %c0_i32_0 : i32, i32, i32
  }
  func.func @transform_4(%arg0: i32, %arg1: i32) -> (i32, i32, i32) {
    %c0_i32 = arith.constant 0 : i32
    %c0_i32_0 = arith.constant 0 : i32
    %c0_i32_1 = arith.constant 0 : i32
    return %arg0, %c0_i32, %c0_i32_0 : i32, i32, i32
  }
  func.func @transform_5(%arg0: i32, %arg1: i32) -> (i32, i32, i32) {
    %c0_i32 = arith.constant 0 : i32
    %c0_i32_0 = arith.constant 0 : i32
    %c0_i32_1 = arith.constant 0 : i32
    return %arg0, %c0_i32, %c0_i32_0 : i32, i32, i32
  }
  func.func @transform_6(%arg0: i32, %arg1: i32) -> (i32, i32, i32) {
    %c0_i32 = arith.constant 0 : i32
    %c0_i32_0 = arith.constant 0 : i32
    return %arg0, %c0_i32, %arg1 : i32, i32, i32
  }
}

</mosaic_0001>

<llo_original>
// kernel: tpu_custom_call.1
$region0: #{tpu_custom_call.1}
  #allocation0 [shape = 'u32[]', space=smem, size = 0x4, offset = 0x4, fixed_abs, tag = 'smem constant byte address 0x4 - core index']
  #allocation1 [shape = 'u32[144,128]{1,0:T(1,128)}', space=vmem, size = 0x12000, scoped, tag = 'internal scratch']
  %s0 = inlined_call_operand.vmem [shape: f32[2,4,256], index: 0, kind: input, shape index: {}]
  %s1 = inlined_call_operand.vmem [shape: f32[2,4,256], index: 1, kind: input, shape index: {}]
  %s2 = inlined_call_operand.hbm [shape: f32[2,4,256], index: 2, kind: input, shape index: {}]
  %s3 = inlined_call_operand.vmem [shape: f32[2,4,1], index: 3, kind: input, shape index: {}]
  %s4 = inlined_call_operand.vmem [shape: f32[2,4,1], index: 4, kind: input, shape index: {}]
  %s5 = inlined_call_operand.vmem [shape: f32[2,4,1], index: 5, kind: input, shape index: {}]
  %s6 = inlined_call_operand.hbm [shape: f32[2,4,256], index: 6, kind: output, shape index: {}]
  %s7 = sld [smem:[#allocation0]]
  $region61: #{tpu_custom_call.1} parent=0
    _
  %s9 = ssub.s32 1, %s7
  %s10 = scalar_select 0, %s9, %s7
  $region1: #{tpu_custom_call.1} parent=0
    #allocation2 [shape = 'u8[8192]{0}', space=vmem, size = 0x2000, scoped, tag = 'input window, operand 2']
    #allocation3 [shape = 's32[2]{0}', space=sflag, size = 0x8, scoped, tag = 'scoped memory for tpu_custom_call.1']
    #allocation4 [shape = 's32[2]{0}', space=sflag, size = 0x8, scoped, tag = 'scoped memory for tpu_custom_call.1']
    #allocation5 [shape = 'u8[8192]{0}', space=vmem, size = 0x2000, scoped, tag = 'output window, operand 0']
    %11 = vsyncpa [#allocation3], 0
    %s12 = scalar_lea.sflag [#allocation3], 1
    %13 = vsyncpa %s12, 0
    %14 = vsyncpa [#allocation4], 0
    %s15 = scalar_lea.sflag [#allocation4], 1
    %16 = vsyncpa %s15, 0
    loop: start=0, step=1, limit=4
    $region2: #{tpu_custom_call.1} parent=1 // loop_pre_header
      _
    $region3: #{tpu_custom_call.1} parent=1 // loop_header
      %s18 = sphi 0, %s22
      %p19 = scmp.ge.s32.totalorder %s18, 4
      %s25 = sphi 0, %s37
      %s26 = sphi 0, %s33
      %s27 = sphi 0, %s25
      %s28 = sphi 0, %s26
      %s29 = sphi 0, %s27
      %s30 = sphi 0, %s28
      %s42 = sphi 0, %s44
      %s45 = sphi 0, %s42
      %s46 = sphi 0, %s45
      %s62 = sphi 0, %s46
      %s70 = sphi 0, %s72
      %s73 = sphi 0, %s70
      %s74 = sphi 0, %s73
      %s90 = sphi 0, %s74
      %s98 = sphi 0, %s100
      %s101 = sphi 0, %s98
      %s102 = sphi 0, %s101
      %s118 = sphi 0, %s102
      %s124 = sphi 0, %s126
      %s127 = sphi 0, %s124
      %s128 = sphi 0, %s127
      %s144 = sphi 0, %s128
      %s150 = sphi 0, %s152
      %s153 = sphi 0, %s150
      %s154 = sphi 0, %s153
      %s170 = sphi 0, %s154
      %s176 = sphi 0, %s178
      %s179 = sphi 0, %s176
      %s180 = sphi 0, %s179
      %s196 = sphi 0, %s180
      %s204 = sphi 0, %s206
      %s207 = sphi 0, %s204
      %s208 = sphi 0, %s207
      %s224 = sphi 0, %s208
    $region4: #{tpu_custom_call.1} parent=1 // loop_header_branch
      %21 = sbr.rel (%p19) target = $region8
    $region5: #{tpu_custom_call.1} parent=1 // loop_body
      %s23 = ssub.s32 %s18, 1
      %s24 = ssub.s32 %s18, 2
      %s31 = sadd.s32 1, %s26
      %p32 = scmp.ge.s32.totalorder %s31, 1
      %s33 = scalar_select %p32, 0, %s31
      %s34 = sadd.s32 1, %s25
      %s35 = scalar_select %p32, %s34, %s25
      %p36 = scmp.ge.s32.totalorder %s35, 2
      %s37 = scalar_select %p36, 0, %s35
      %s38 = ssub.s32 %s25, %s37
      %s39 = ssub.s32 %s26, %s33
      %s40 = sor.u32 %s38, %s39
      %p41 = scmp.eq.s32.totalorder %s40, 0
      %s43 = sadd.s32 %s42, 1
      %s44 = scalar_select %p41, %s42, %s43
      %p47 = pneg %p41
      %p48 = scmp.eq.s32.totalorder %s18, 1
      %p49 = por %p47, %p48
      %p50 = scmp.ne.s32.totalorder %s42, %s45
      %p51 = scmp.eq.s32.totalorder %s18, 0
      %p52 = por %p50, %p51
      %p53 = scmp.ne.s32.totalorder %s42, %s45
      %p54 = scmp.eq.s32.totalorder %s23, 1
      %p55 = por %p53, %p54
      %p56 = scmp.ne.s32.totalorder %s45, %s46
      %p57 = scmp.eq.s32.totalorder %s23, 0
      %p58 = por %p56, %p57
      %p59 = scmp.ne.s32.totalorder %s45, %s46
      %p60 = scmp.eq.s32.totalorder %s24, 1
      %p61 = por %p59, %p60
      %p63 = scmp.ne.s32.totalorder %s46, %s62
      %p64 = scmp.eq.s32.totalorder %s24, 0
      %p65 = por %p63, %p64
      %s66 = ssub.s32 %s25, %s37
      %s67 = ssub.s32 %s26, %s33
      %s68 = sor.u32 %s66, %s67
      %p69 = scmp.eq.s32.totalorder %s68, 0
      %s71 = sadd.s32 %s70, 1
      %s72 = scalar_select %p69, %s70, %s71
      %p75 = pneg %p69
      %p76 = scmp.eq.s32.totalorder %s18, 1
      %p77 = por %p75, %p76
      %p78 = scmp.ne.s32.totalorder %s70, %s73
      %p79 = scmp.eq.s32.totalorder %s18, 0
      %p80 = por %p78, %p79
      %p81 = scmp.ne.s32.totalorder %s70, %s73
      %p82 = scmp.eq.s32.totalorder %s23, 1
      %p83 = por %p81, %p82
      %p84 = scmp.ne.s32.totalorder %s73, %s74
      %p85 = scmp.eq.s32.totalorder %s23, 0
      %p86 = por %p84, %p85
      %p87 = scmp.ne.s32.totalorder %s73, %s74
      %p88 = scmp.eq.s32.totalorder %s24, 1
      %p89 = por %p87, %p88
      %p91 = scmp.ne.s32.totalorder %s74, %s90
      %p92 = scmp.eq.s32.totalorder %s24, 0
      %p93 = por %p91, %p92
      %s94 = ssub.s32 %s25, %s37
      %s95 = ssub.s32 %s26, %s33
      %s96 = sor.u32 %s94, %s95
      %p97 = scmp.eq.s32.totalorder %s96, 0
      %s99 = sadd.s32 %s98, 1
      %s100 = scalar_select %p97, %s98, %s99
      %p103 = pneg %p97
      %p104 = scmp.eq.s32.totalorder %s18, 1
      %p105 = por %p103, %p104
      %p106 = scmp.ne.s32.totalorder %s98, %s101
      %p107 = scmp.eq.s32.totalorder %s18, 0
      %p108 = por %p106, %p107
      %p109 = scmp.ne.s32.totalorder %s98, %s101
      %p110 = scmp.eq.s32.totalorder %s23, 1
      %p111 = por %p109, %p110
      %p112 = scmp.ne.s32.totalorder %s101, %s102
      %p113 = scmp.eq.s32.totalorder %s23, 0
      %p114 = por %p112, %p113
      %p115 = scmp.ne.s32.totalorder %s101, %s102
      %p116 = scmp.eq.s32.totalorder %s24, 1
      %p117 = por %p115, %p116
      %p119 = scmp.ne.s32.totalorder %s102, %s118
      %p120 = scmp.eq.s32.totalorder %s24, 0
      %p121 = por %p119, %p120
      %s122 = ssub.s32 %s25, %s37
      %p123 = scmp.eq.s32.totalorder %s122, 0
      %s125 = sadd.s32 %s124, 1
      %s126 = scalar_select %p123, %s124, %s125
      %p129 = pneg %p123
      %p130 = scmp.eq.s32.totalorder %s18, 1
      %p131 = por %p129, %p130
      %p132 = scmp.ne.s32.totalorder %s124, %s127
      %p133 = scmp.eq.s32.totalorder %s18, 0
      %p134 = por %p132, %p133
      %p135 = scmp.ne.s32.totalorder %s124, %s127
      %p136 = scmp.eq.s32.totalorder %s23, 1
      %p137 = por %p135, %p136
      %p138 = scmp.ne.s32.totalorder %s127, %s128
      %p139 = scmp.eq.s32.totalorder %s23, 0
      %p140 = por %p138, %p139
      %p141 = scmp.ne.s32.totalorder %s127, %s128
      %p142 = scmp.eq.s32.totalorder %s24, 1
      %p143 = por %p141, %p142
      %p145 = scmp.ne.s32.totalorder %s128, %s144
      %p146 = scmp.eq.s32.totalorder %s24, 0
      %p147 = por %p145, %p146
      %s148 = ssub.s32 %s25, %s37
      %p149 = scmp.eq.s32.totalorder %s148, 0
      %s151 = sadd.s32 %s150, 1
      %s152 = scalar_select %p149, %s150, %s151
      %p155 = pneg %p149
      %p156 = scmp.eq.s32.totalorder %s18, 1
      %p157 = por %p155, %p156
      %p158 = scmp.ne.s32.totalorder %s150, %s153
      %p159 = scmp.eq.s32.totalorder %s18, 0
      %p160 = por %p158, %p159
      %p161 = scmp.ne.s32.totalorder %s150, %s153
      %p162 = scmp.eq.s32.totalorder %s23, 1
      %p163 = por %p161, %p162
      %p164 = scmp.ne.s32.totalorder %s153, %s154
      %p165 = scmp.eq.s32.totalorder %s23, 0
      %p166 = por %p164, %p165
      %p167 = scmp.ne.s32.totalorder %s153, %s154
      %p168 = scmp.eq.s32.totalorder %s24, 1
      %p169 = por %p167, %p168
      %p171 = scmp.ne.s32.totalorder %s154, %s170
      %p172 = scmp.eq.s32.totalorder %s24, 0
      %p173 = por %p171, %p172
      %s174 = ssub.s32 %s25, %s37
      %p175 = scmp.eq.s32.totalorder %s174, 0
      %s177 = sadd.s32 %s176, 1
      %s178 = scalar_select %p175, %s176, %s177
      %p181 = pneg %p175
      %p182 = scmp.eq.s32.totalorder %s18, 1
      %p183 = por %p181, %p182
      %p184 = scmp.ne.s32.totalorder %s176, %s179
      %p185 = scmp.eq.s32.totalorder %s18, 0
      %p186 = por %p184, %p185
      %p187 = scmp.ne.s32.totalorder %s176, %s179
      %p188 = scmp.eq.s32.totalorder %s23, 1
      %p189 = por %p187, %p188
      %p190 = scmp.ne.s32.totalorder %s179, %s180
      %p191 = scmp.eq.s32.totalorder %s23, 0
      %p192 = por %p190, %p191
      %p193 = scmp.ne.s32.totalorder %s179, %s180
      %p194 = scmp.eq.s32.totalorder %s24, 1
      %p195 = por %p193, %p194
      %p197 = scmp.ne.s32.totalorder %s180, %s196
      %p198 = scmp.eq.s32.totalorder %s24, 0
      %p199 = por %p197, %p198
      %s200 = ssub.s32 %s25, %s37
      %s201 = ssub.s32 %s26, %s33
      %s202 = sor.u32 %s200, %s201
      %p203 = scmp.eq.s32.totalorder %s202, 0
      %s205 = sadd.s32 %s204, 1
      %s206 = scalar_select %p203, %s204, %s205
      %p209 = pneg %p203
      %p210 = scmp.eq.s32.totalorder %s18, 1
      %p211 = por %p209, %p210
      %p212 = scmp.ne.s32.totalorder %s204, %s207
      %p213 = scmp.eq.s32.totalorder %s18, 0
      %p214 = por %p212, %p213
      %p215 = scmp.ne.s32.totalorder %s204, %s207
      %p216 = scmp.eq.s32.totalorder %s23, 1
      %p217 = por %p215, %p216
      %p218 = scmp.ne.s32.totalorder %s207, %s208
      %p219 = scmp.eq.s32.totalorder %s23, 0
      %p220 = por %p218, %p219
      %p221 = scmp.ne.s32.totalorder %s207, %s208
      %p222 = scmp.eq.s32.totalorder %s24, 1
      %p223 = por %p221, %p222
      %p225 = scmp.ne.s32.totalorder %s208, %s224
      %p226 = scmp.eq.s32.totalorder %s24, 0
      %p227 = por %p225, %p226
      %p228 = scmp.le.s32.totalorder 1, %s18
      %p229 = scmp.lt.s32.totalorder %s18, 3
      %p230 = pnand %p228, %p229
      %p231 = pneg %p230
      // Predicated region
      $region9: #{tpu_custom_call.1} parent=5 // pred_check
        _
      $region10: #{tpu_custom_call.1} parent=5 // pred_check_branch
        %233 = sbr.rel (%p230) target = $region12
      $region11: #{tpu_custom_call.1} parent=5 // pred_region
        %s234 = ssub.s32 %s18, 1
      $region12: #{tpu_custom_call.1} parent=5 // pred_fallthru
        _
      %p235 = scmp.lt.s32.totalorder %s18, 2
      // Predicated region
      $region13: #{tpu_custom_call.1} parent=5 // pred_check
        %p236 = pneg %p235
      $region14: #{tpu_custom_call.1} parent=5 // pred_check_branch
        %238 = sbr.rel (%p236) target = $region16
      $region15: #{tpu_custom_call.1} parent=5 // pred_region
        // Predicated region
        $region17: #{tpu_custom_call.1} parent=15 // pred_check
          %p239 = pneg %p52
        $region18: #{tpu_custom_call.1} parent=15 // pred_check_branch
          %241 = sbr.rel (%p239) target = $region20
        $region19: #{tpu_custom_call.1} parent=15 // pred_region
          %s242 = smul.u32 2, %s26
          %p243 = scmp.lt.s32.totalorder %s25, 1
          %s244 = scalar_select %p243, %s25, 1
          %p245 = scmp.lt.s32.totalorder %s242, 1
          %s246 = scalar_select %p245, %s242, 1
          %s247 = smul.addr %s244, 2
          %s248 = sadd.s32 %s246, %s247
          %s249 = smul.addr %s248, 4
          %s250 = scalar_lea.vmem %s0, %s249
          %s251 = smul.u32 2, %s26
        $region20: #{tpu_custom_call.1} parent=15 // pred_fallthru
          _
        // Predicated region
        $region21: #{tpu_custom_call.1} parent=15 // pred_check
          %p252 = pneg %p80
        $region22: #{tpu_custom_call.1} parent=15 // pred_check_branch
          %254 = sbr.rel (%p252) target = $region24
        $region23: #{tpu_custom_call.1} parent=15 // pred_region
          %s255 = smul.u32 2, %s26
          %p256 = scmp.lt.s32.totalorder %s25, 1
          %s257 = scalar_select %p256, %s25, 1
          %p258 = scmp.lt.s32.totalorder %s255, 1
          %s259 = scalar_select %p258, %s255, 1
          %s260 = smul.addr %s257, 2
          %s261 = sadd.s32 %s259, %s260
          %s262 = smul.addr %s261, 4
          %s263 = scalar_lea.vmem %s1, %s262
          %s264 = smul.u32 2, %s26
        $region24: #{tpu_custom_call.1} parent=15 // pred_fallthru
          _
        // Predicated region
        $region25: #{tpu_custom_call.1} parent=15 // pred_check
          %p265 = pneg %p108
        $region26: #{tpu_custom_call.1} parent=15 // pred_check_branch
          %267 = sbr.rel (%p265) target = $region28
        $region27: #{tpu_custom_call.1} parent=15 // pred_region
          %s268 = sand.u32 %s98, 1
          %s269 = scalar_lea.sflag [#allocation3], %s268
          %s270 = sand.u32 %s98, 1
          %s271 = smul.addr %s270, 8
          %s272 = scalar_lea.vmem [#allocation2], %s271
          %s273 = smul.u32 2, %s26
          %s275 = ssub.s32 128, 128
          %276 = vsyncadd %s269, %s275
          %s277 = smul.addr %s25, 2
          %s278 = sadd.s32 %s273, %s277
          %s279 = smul.addr %s278, 64
          %s280 = scalar_lea.hbm %s2, %s279
          %s282 = sshll.u32 %s272, 4
          %s283 = int_to_ptr.vmem [resolvable:$true] %s282
          %285 = dma.hbm_to_vmem [thread:$0]  %s280, 128, %s283, %s269
        $region28: #{tpu_custom_call.1} parent=15 // pred_fallthru
          _
        // Predicated region
        $region29: #{tpu_custom_call.1} parent=15 // pred_check
          %p286 = pneg %p134
        $region30: #{tpu_custom_call.1} parent=15 // pred_check_branch
          %288 = sbr.rel (%p286) target = $region32
        $region31: #{tpu_custom_call.1} parent=15 // pred_region
          %p289 = scmp.lt.s32.totalorder %s25, 1
          %s290 = scalar_select %p289, %s25, 1
          %s291 = smul.addr %s290, 4
          %s292 = scalar_lea.vmem %s3, %s291
        $region32: #{tpu_custom_call.1} parent=15 // pred_fallthru
          _
        // Predicated region
        $region33: #{tpu_custom_call.1} parent=15 // pred_check
          %p293 = pneg %p160
        $region34: #{tpu_custom_call.1} parent=15 // pred_check_branch
          %295 = sbr.rel (%p293) target = $region36
        $region35: #{tpu_custom_call.1} parent=15 // pred_region
          %p296 = scmp.lt.s32.totalorder %s25, 1
          %s297 = scalar_select %p296, %s25, 1
          %s298 = smul.addr %s297, 4
          %s299 = scalar_lea.vmem %s4, %s298
        $region36: #{tpu_custom_call.1} parent=15 // pred_fallthru
          _
        // Predicated region
        $region37: #{tpu_custom_call.1} parent=15 // pred_check
          %p300 = pneg %p186
        $region38: #{tpu_custom_call.1} parent=15 // pred_check_branch
          %302 = sbr.rel (%p300) target = $region40
        $region39: #{tpu_custom_call.1} parent=15 // pred_region
          %p303 = scmp.lt.s32.totalorder %s25, 1
          %s304 = scalar_select %p303, %s25, 1
          %s305 = smul.addr %s304, 4
          %s306 = scalar_lea.vmem %s5, %s305
        $region40: #{tpu_custom_call.1} parent=15 // pred_fallthru
          _
      $region16: #{tpu_custom_call.1} parent=5 // pred_fallthru
        _
      %p307 = scmp.le.s32.totalorder 1, %s18
      %p308 = scmp.lt.s32.totalorder %s18, 3
      %p309 = pnand %p307, %p308
      %p310 = pneg %p309
      // Predicated region
      $region41: #{tpu_custom_call.1} parent=5 // pred_check
        _
      $region42: #{tpu_custom_call.1} parent=5 // pred_check_branch
        %312 = sbr.rel (%p309) target = $region44
      $region43: #{tpu_custom_call.1} parent=5 // pred_region
        %s313 = ssub.s32 %s18, 1
        %s314 = sand.u32 %s101, 1
        %s315 = scalar_lea.sflag [#allocation3], %s314
        %s316 = sand.u32 %s101, 1
        %s317 = smul.addr %s316, 8
        %s318 = scalar_lea.vmem [#allocation2], %s317
        // Predicated region
        $region45: #{tpu_custom_call.1} parent=43 // pred_check
          %p319 = pneg %p114
        $region46: #{tpu_custom_call.1} parent=43 // pred_check_branch
          %321 = sbr.rel (%p319) target = $region48
        $region47: #{tpu_custom_call.1} parent=43 // pred_region
          %322 = dma.done %s315, 128
        $region48: #{tpu_custom_call.1} parent=43 // pred_fallthru
          _
        %s323 = smul.u32 2, %s28
        %p324 = scmp.lt.s32.totalorder %s27, 1
        %s325 = scalar_select %p324, %s27, 1
        %p326 = scmp.lt.s32.totalorder %s323, 1
        %s327 = scalar_select %p326, %s323, 1
        %s328 = smul.addr %s325, 2
        %s329 = sadd.s32 %s327, %s328
        %s330 = smul.addr %s329, 4
        %s331 = scalar_lea.vmem %s0, %s330
        %p332 = pneg %p58
        %p333 = pneg %p55
        %s334 = smul.u32 2, %s28
        %p335 = scmp.lt.s32.totalorder %s27, 1
        %s336 = scalar_select %p335, %s27, 1
        %p337 = scmp.lt.s32.totalorder %s334, 1
        %s338 = scalar_select %p337, %s334, 1
        %s339 = smul.addr %s336, 2
        %s340 = sadd.s32 %s338, %s339
        %s341 = smul.addr %s340, 4
        %s342 = scalar_lea.vmem %s1, %s341
        %p343 = pneg %p86
        %p344 = pneg %p83
        %s345 = sand.u32 %s101, 1
        %s346 = scalar_lea.sflag [#allocation3], %s345
        %s347 = sand.u32 %s101, 1
        %s348 = smul.addr %s347, 8
        %s349 = scalar_lea.vmem [#allocation2], %s348
        %p350 = pneg %p114
        %p351 = pneg %p111
        %p352 = scmp.lt.s32.totalorder %s27, 1
        %s353 = scalar_select %p352, %s27, 1
        %s354 = smul.addr %s353, 4
        %s355 = scalar_lea.vmem %s3, %s354
        %p356 = pneg %p140
        %p357 = pneg %p137
        %p358 = scmp.lt.s32.totalorder %s27, 1
        %s359 = scalar_select %p358, %s27, 1
        %s360 = smul.addr %s359, 4
        %s361 = scalar_lea.vmem %s4, %s360
        %p362 = pneg %p166
        %p363 = pneg %p163
        %p364 = scmp.lt.s32.totalorder %s27, 1
        %s365 = scalar_select %p364, %s27, 1
        %s366 = smul.addr %s365, 4
        %s367 = scalar_lea.vmem %s5, %s366
        %p368 = pneg %p192
        %p369 = pneg %p189
        %p370 = pneg %p220
        %p371 = pneg %p217
        %s372 = sand.u32 %s207, 1
        %s373 = scalar_lea.sflag [#allocation4], %s372
        %s374 = sand.u32 %s207, 1
        %s375 = smul.addr %s374, 8
        %s376 = scalar_lea.vmem [#allocation5], %s375
        %s377 = smul.u32 2, %s28
        %p378 = scmp.lt.s32.totalorder %s27, 1
        %s379 = scalar_select %p378, %s27, 1
        %p380 = scmp.lt.s32.totalorder %s377, 1
        %s381 = scalar_select %p380, %s377, 1
        %s382 = smul.addr %s379, 2
        %s383 = sadd.s32 %s381, %s382
        %s384 = smul.addr %s383, 4
        %s385 = scalar_lea.vmem %s0, %s384
        %s386 = smul.u32 2, %s28
        %s387 = smul.u32 2, %s28
        %p388 = scmp.lt.s32.totalorder %s27, 1
        %s389 = scalar_select %p388, %s27, 1
        %p390 = scmp.lt.s32.totalorder %s387, 1
        %s391 = scalar_select %p390, %s387, 1
        %s392 = smul.addr %s389, 2
        %s393 = sadd.s32 %s391, %s392
        %s394 = smul.addr %s393, 4
        %s395 = scalar_lea.vmem %s1, %s394
        %s396 = smul.u32 2, %s28
        %s397 = smul.u32 2, %s28
        %p398 = scmp.lt.s32.totalorder %s27, 1
        %s399 = scalar_select %p398, %s27, 1
        %s400 = smul.addr %s399, 4
        %s401 = scalar_lea.vmem %s3, %s400
        %p402 = scmp.lt.s32.totalorder %s27, 1
        %s403 = scalar_select %p402, %s27, 1
        %s404 = smul.addr %s403, 4
        %s405 = scalar_lea.vmem %s4, %s404
        %p406 = scmp.lt.s32.totalorder %s27, 1
        %s407 = scalar_select %p406, %s27, 1
        %s408 = smul.addr %s407, 4
        %s409 = scalar_lea.vmem %s5, %s408
        %s410 = smul.u32 2, %s28
        %v411 = vld [vmem:[%s385] sm:$0xff]
        %v412 = vld [vmem:[%s401] sm:$0xf]
        %414 = vset.pattern.permute.xlu0 0
        %415 = vperm.xlu0 %414, %v412
        %v416 = vpop.permute.xlu0 %415
        %v418 = vunpack.c.l.s4 839922192
        %v419 = vunpack.c.0.s8 %v418
        %v420 = vlaneseq
        %v421 = vshrl.u32 %v420, 7
        %v422 = vsub.s32 %v419, %v421
        %v423 = vrot.slane %v416, %v422
        %v425 = vmul.f32 %v411, %v423
        %v426 = vld [vmem:[%s395] sm:$0xff]
        %v427 = vld [vmem:[%s405] sm:$0xf]
        %429 = vset.pattern.permute.xlu0 0
        %430 = vperm.xlu0 %429, %v427
        %v431 = vpop.permute.xlu0 %430
        %v433 = vunpack.c.l.s4 839922192
        %v434 = vunpack.c.0.s8 %v433
        %v435 = vlaneseq
        %v436 = vshrl.u32 %v435, 7
        %v437 = vsub.s32 %v434, %v436
        %v438 = vrot.slane %v431, %v437
        %v440 = vmul.f32 %v426, %v438
        %v441 = vadd.f32 %v425, %v440
        %v442 = vld [vmem:[%s318] sm:$0xff]
        %v443 = vld [vmem:[%s409] sm:$0xf]
        %445 = vset.pattern.permute.xlu0 0
        %446 = vperm.xlu0 %445, %v443
        %v447 = vpop.permute.xlu0 %446
        %v449 = vunpack.c.l.s4 839922192
        %v450 = vunpack.c.0.s8 %v449
        %v451 = vlaneseq
        %v452 = vshrl.u32 %v451, 7
        %v453 = vsub.s32 %v450, %v452
        %v454 = vrot.slane %v447, %v453
        %v456 = vmul.f32 %v442, %v454
        %v457 = vadd.f32 %v441, %v456
        %458 = vst [vmem:[%s376] sm:$0xff] %v457
        %s459 = sand.u32 %s207, 1
        %s460 = scalar_lea.sflag [#allocation4], %s459
        %s461 = sand.u32 %s207, 1
        %s462 = smul.addr %s461, 8
        %s463 = scalar_lea.vmem [#allocation5], %s462
        // Predicated region
        $region49: #{tpu_custom_call.1} parent=43 // pred_check
          %p464 = pneg %p217
        $region50: #{tpu_custom_call.1} parent=43 // pred_check_branch
          %466 = sbr.rel (%p464) target = $region52
        $region51: #{tpu_custom_call.1} parent=43 // pred_region
          %s467 = smul.u32 2, %s28
          %s469 = ssub.s32 128, 128
          %470 = vsyncadd %s460, %s469
          %s471 = smul.addr %s27, 2
          %s472 = sadd.s32 %s467, %s471
          %s473 = smul.addr %s472, 64
          %s474 = scalar_lea.hbm %s6, %s473
          %s476 = sshll.u32 %s463, 4
          %s477 = int_to_ptr.vmem [resolvable:$true] %s476
          %479 = dma.vmem_to_hbm [thread:$0]  %s477, 128, %s474, %s460
        $region52: #{tpu_custom_call.1} parent=43 // pred_fallthru
          _
      $region44: #{tpu_custom_call.1} parent=5 // pred_fallthru
        _
      %p480 = scmp.le.s32.totalorder 2, %s18
      // Predicated region
      $region53: #{tpu_custom_call.1} parent=5 // pred_check
        %p481 = pneg %p480
      $region54: #{tpu_custom_call.1} parent=5 // pred_check_branch
        %483 = sbr.rel (%p481) target = $region56
      $region55: #{tpu_custom_call.1} parent=5 // pred_region
        %s484 = ssub.s32 %s18, 2
        // Predicated region
        $region57: #{tpu_custom_call.1} parent=55 // pred_check
          %p485 = pneg %p223
        $region58: #{tpu_custom_call.1} parent=55 // pred_check_branch
          %487 = sbr.rel (%p485) target = $region60
        $region59: #{tpu_custom_call.1} parent=55 // pred_region
          %s488 = sand.u32 %s208, 1
          %s489 = scalar_lea.sflag [#allocation4], %s488
          %s490 = sand.u32 %s208, 1
          %s491 = smul.addr %s490, 8
          %s492 = scalar_lea.vmem [#allocation5], %s491
          %493 = dma.done %s489, 128
        $region60: #{tpu_custom_call.1} parent=55 // pred_fallthru
          _
      $region56: #{tpu_custom_call.1} parent=5 // pred_fallthru
        _
    $region6: #{tpu_custom_call.1} parent=1 // loop_footer
      %s22 = sadd.s32 1, %s18
    $region7: #{tpu_custom_call.1} parent=1 // loop_footer_branch
      %17 = sbr.rel target = $region3
    $region8: #{tpu_custom_call.1} parent=1 // loop_exit
      _
    %494 = vsyncpa [#allocation3], 1
    %s495 = scalar_lea.sflag [#allocation3], 1
    %496 = vsyncpa %s495, 1
    %497 = vsyncpa [#allocation4], 1
    %s498 = scalar_lea.sflag [#allocation4], 1
    %499 = vsyncpa %s498, 1

</llo_original>
